<compile_context>
chip_gen: v6e
topology: v6e:2x2x1
jax: 0.10.0
libtpu: 0.0.40
codegen_flags: <defaults>
</compile_context>

<pallas_src>
import functools

import jax
import jax.numpy as jnp
from jax.experimental import pallas as pl
from jax.experimental.pallas import tpu as pltpu


def tcam_kernel(x_ref, wfa_ref, bfa_ref, wct_ref, bc_ref, out_ref, *, seq_len):
    rows, hidden = x_ref.shape          # rows = b_blk * seq_len
    b_blk = rows // seq_len

    # Fused feature+attention projection: one (rows, H) @ (H, 2H) MXU op with
    # f32 accumulation; biases added in f32.
    proj = jnp.dot(x_ref[...], wfa_ref[...],
                   preferred_element_type=jnp.float32) + bfa_ref[...]   # (rows, 2H)

    feats = proj[:, :hidden].reshape(b_blk, seq_len, hidden)            # f32
    att = proj[:, hidden:].reshape(b_blk, seq_len, hidden)              # f32

    # softmax over the sequence dim (torch dim=-2), all elementwise math in f32
    att = att - jnp.max(att, axis=1, keepdims=True)
    e = jnp.exp(att)
    att = e * pl.reciprocal(jnp.sum(e, axis=1, keepdims=True), approx=True)

    # attention-weighted sum over the sequence -> (b_blk, H)
    seq_repr = jnp.sum(att * feats, axis=1)

    # classifier projection on the whole (b_blk, H) slab -> (b_blk, C)
    logits = jnp.dot(seq_repr.astype(wct_ref.dtype), wct_ref[...],
                     preferred_element_type=jnp.float32) + bc_ref[...]

    out_ref[...] = logits.astype(out_ref.dtype)


def _pick_b_blk(batch, seq_len, target_rows=256):
    """Batch rows per grid step: aim for >= target_rows MXU rows per step,
    keep >= 2 grid blocks when the batch allows (v7x has 2 TensorCores), and
    use a divisor of `batch` so no ragged boundary block is needed."""
    want = min(batch, max(1, pl.cdiv(target_rows, seq_len)))
    if batch > 1:
        want = min(want, max(1, batch // 2))
    for d in range(want, 0, -1):
        if batch % d == 0:
            return d
    return 1


def tcam_classifier(x, wf, bf, wa, ba, wc, bc, *,
                    compute_dtype=jnp.bfloat16, b_blk=None):
    B, T, H = x.shape
    C = wc.shape[0]
    if b_blk is None:
        b_blk = _pick_b_blk(B, T)
    assert B % b_blk == 0, (B, b_blk)
    rows = b_blk * T

    # Pre-transpose to (in, out) layout and fuse the two hidden projections
    # into a single (H, 2H) weight; biases stay f32.
    w_fa = jnp.concatenate([wf.T, wa.T], axis=1).astype(compute_dtype)   # (H, 2H)
    b_fa = jnp.concatenate([bf, ba]).reshape(1, 2 * H).astype(jnp.float32)
    wc_t = wc.T.astype(compute_dtype)                                    # (H, C)
    bc2 = bc.reshape(1, C).astype(jnp.float32)

    # Flatten batch/sequence so each grid step feeds a lane-dense
    # (b_blk*T, H) slab straight into the MXU.
    x2 = x.reshape(B * T, H).astype(compute_dtype)

    grid_spec = pltpu.PrefetchScalarGridSpec(
        num_scalar_prefetch=0,
        grid=(B // b_blk,),
        in_specs=[
            pl.BlockSpec((rows, H), lambda b: (b, 0)),     # x rows of this block
            # Grid-invariant weights / biases (constant index_map -> resident).
            pl.BlockSpec((H, 2 * H), lambda b: (0, 0)),    # fused [Wf.T | Wa.T]
            pl.BlockSpec((1, 2 * H), lambda b: (0, 0)),    # fused [bf | ba]
            pl.BlockSpec((H, C), lambda b: (0, 0)),        # Wc.T
            pl.BlockSpec((1, C), lambda b: (0, 0)),        # bc
        ],
        out_specs=pl.BlockSpec((b_blk, C), lambda b: (b, 0)),
    )

    return pl.pallas_call(
        functools.partial(tcam_kernel, seq_len=T),
        out_shape=jax.ShapeDtypeStruct((B, C), x.dtype),
        grid_spec=grid_spec,
        compiler_params=pltpu.CompilerParams(
            dimension_semantics=("parallel",)),
    )(x2, w_fa, b_fa, wc_t, bc2)


def tcam_reference(x, wf, bf, wa, ba, wc, bc):
    features = x @ wf.T + bf
    att = x @ wa.T + ba
    att = jax.nn.softmax(att, axis=-2)
    seq_repr = jnp.sum(att * features, axis=-2)
    return seq_repr @ wc.T + bc


if __name__ == "__main__":
    B, T, H, C = 16, 8, 32, 8   # batch, seq, hidden_dim, num_classes

    key = jax.random.PRNGKey(0)
    kx, kwf, kbf, kwa, kba, kwc, kbc = jax.random.split(key, 7)

    x = jax.random.normal(kx, (B, T, H), dtype=jnp.float32)
    # deterministic synthetic params (shapes per nn.Linear: W=(out,in), b=(out,))
    wf = jax.random.normal(kwf, (H, H), dtype=jnp.float32) * 0.1
    bf = jax.random.normal(kbf, (H,), dtype=jnp.float32) * 0.1
    wa = jax.random.normal(kwa, (H, H), dtype=jnp.float32) * 0.1
    ba = jax.random.normal(kba, (H,), dtype=jnp.float32) * 0.1
    wc = jax.random.normal(kwc, (C, H), dtype=jnp.float32) * 0.1
    bc = jax.random.normal(kbc, (C,), dtype=jnp.float32) * 0.1

    ref = tcam_reference(x, wf, bf, wa, ba, wc, bc)

    # f32 MXU path (tolerance covers the approximate softmax reciprocal).
    out_f32 = jax.block_until_ready(
        tcam_classifier(x, wf, bf, wa, ba, wc, bc, compute_dtype=jnp.float32))
    assert out_f32.shape == (B, C)
    assert jnp.allclose(out_f32, ref, atol=1e-2, rtol=1e-2), (out_f32, ref)

    # bf16 MXU path (default): bf16 matmul inputs, f32 accumulation + softmax.
    out_bf16 = jax.block_until_ready(
        tcam_classifier(x, wf, bf, wa, ba, wc, bc))
    assert out_bf16.shape == (B, C)
    assert jnp.allclose(out_bf16, ref, atol=5e-2, rtol=5e-2), (out_bf16, ref)

    print("KERNEL_OK")
</pallas_src>

<mosaic_0001>
module attributes {stable_mosaic.version = 11 : i64} {
  func.func @tcam_kernel(%arg0: i32, %arg1: memref<64x32xf32, #tpu.memory_space<vmem>>, %arg2: memref<32x64xf32, #tpu.memory_space<vmem>>, %arg3: memref<1x64xf32, #tpu.memory_space<vmem>>, %arg4: memref<32x8xf32, #tpu.memory_space<vmem>>, %arg5: memref<1x8xf32, #tpu.memory_space<vmem>>, %arg6: memref<8x8xf32, #tpu.memory_space<vmem>>) attributes {dimension_semantics = [#tpu.dimension_semantics<parallel>], iteration_bounds = array<i64: 2>, scalar_prefetch = 0 : i64, scratch_operands = 0 : i64, tpu.core_type = #tpu.core_type<tc>, window_params = [{transform_indices = @transform_0, window_bounds = array<i64: 64, 32>}, {pipeline_mode = #tpu.pipeline_mode<synchronous>, transform_indices = @transform_1, window_bounds = array<i64: 32, 64>}, {pipeline_mode = #tpu.pipeline_mode<synchronous>, transform_indices = @transform_2, window_bounds = array<i64: 1, 64>}, {pipeline_mode = #tpu.pipeline_mode<synchronous>, transform_indices = @transform_3, window_bounds = array<i64: 32, 8>}, {pipeline_mode = #tpu.pipeline_mode<synchronous>, transform_indices = @transform_4, window_bounds = array<i64: 1, 8>}, {transform_indices = @transform_5, window_bounds = array<i64: 8, 8>}]} {
    %c0 = arith.constant 0 : index
    %c0_0 = arith.constant 0 : index
    %0 = vector.load %arg1[%c0, %c0_0] : memref<64x32xf32, #tpu.memory_space<vmem>>, vector<64x32xf32>
    %c0_1 = arith.constant 0 : index
    %c0_2 = arith.constant 0 : index
    %1 = vector.load %arg2[%c0_1, %c0_2] : memref<32x64xf32, #tpu.memory_space<vmem>>, vector<32x64xf32>
    %cst = arith.constant dense<0.000000e+00> : vector<64x64xf32>
    %2 = tpu.matmul %0, %1, %cst {dimension_numbers = #tpu.dot_dimension_numbers<[1], [0], [0], [1], [0, 0, 1, 1], [], []>} : vector<64x32xf32>, vector<32x64xf32>, vector<64x64xf32> -> vector<64x64xf32>
    %c0_3 = arith.constant 0 : index
    %c0_4 = arith.constant 0 : index
    %3 = vector.load %arg3[%c0_3, %c0_4] : memref<1x64xf32, #tpu.memory_space<vmem>>, vector<1x64xf32>
    %4 = vector.broadcast %3 : vector<1x64xf32> to vector<64x64xf32>
    %5 = arith.addf %2, %4 : vector<64x64xf32>
    %6 = vector.extract_strided_slice %5 {offsets = [0, 0], sizes = [64, 32], strides = [1, 1]} : vector<64x64xf32> to vector<64x32xf32>
    %7 = vector.shape_cast %6 : vector<64x32xf32> to vector<8x8x32xf32>
    %8 = vector.extract_strided_slice %5 {offsets = [0, 32], sizes = [64, 32], strides = [1, 1]} : vector<64x64xf32> to vector<64x32xf32>
    %9 = vector.shape_cast %8 : vector<64x32xf32> to vector<8x8x32xf32>
    %cst_5 = arith.constant dense<0xFF800000> : vector<8x32xf32>
    %10 = vector.multi_reduction <maximumf>, %9, %cst_5 [1] : vector<8x8x32xf32> to vector<8x32xf32>
    %11 = vector.shape_cast %10 : vector<8x32xf32> to vector<8x1x32xf32>
    %12 = vector.broadcast %11 : vector<8x1x32xf32> to vector<8x8x32xf32>
    %13 = arith.subf %9, %12 : vector<8x8x32xf32>
    %14 = math.exp %13 : vector<8x8x32xf32>
    %cst_6 = arith.constant dense<0.000000e+00> : vector<8x32xf32>
    %15 = vector.multi_reduction <add>, %14, %cst_6 [1] : vector<8x8x32xf32> to vector<8x32xf32>
    %16 = vector.shape_cast %15 : vector<8x32xf32> to vector<8x1x32xf32>
    %17 = tpu.reciprocal %16 {approx = true} : vector<8x1x32xf32> -> vector<8x1x32xf32>
    %18 = vector.broadcast %17 : vector<8x1x32xf32> to vector<8x8x32xf32>
    %19 = arith.mulf %14, %18 : vector<8x8x32xf32>
    %20 = arith.mulf %19, %7 : vector<8x8x32xf32>
    %cst_7 = arith.constant dense<0.000000e+00> : vector<8x32xf32>
    %21 = vector.multi_reduction <add>, %20, %cst_7 [1] : vector<8x8x32xf32> to vector<8x32xf32>
    %c0_8 = arith.constant 0 : index
    %c0_9 = arith.constant 0 : index
    %22 = vector.load %arg4[%c0_8, %c0_9] : memref<32x8xf32, #tpu.memory_space<vmem>>, vector<32x8xf32>
    %cst_10 = arith.constant dense<0.000000e+00> : vector<8x8xf32>
    %23 = tpu.matmul %21, %22, %cst_10 {dimension_numbers = #tpu.dot_dimension_numbers<[1], [0], [0], [1], [0, 0, 1, 1], [], []>} : vector<8x32xf32>, vector<32x8xf32>, vector<8x8xf32> -> vector<8x8xf32>
    %c0_11 = arith.constant 0 : index
    %c0_12 = arith.constant 0 : index
    %24 = vector.load %arg5[%c0_11, %c0_12] : memref<1x8xf32, #tpu.memory_space<vmem>>, vector<1x8xf32>
    %25 = vector.broadcast %24 : vector<1x8xf32> to vector<8x8xf32>
    %26 = arith.addf %23, %25 : vector<8x8xf32>
    %c0_13 = arith.constant 0 : index
    %c0_14 = arith.constant 0 : index
    %27 = vector.load %arg6[%c0_13, %c0_14] : memref<8x8xf32, #tpu.memory_space<vmem>>, vector<8x8xf32>
    tpu.vector_store %arg6[%c0_13, %c0_14], %26 {strides = array<i32>} : memref<8x8xf32, #tpu.memory_space<vmem>>, vector<8x8xf32>,
    return
  }
  func.func @transform_0(%arg0: i32) -> (i32, i32) {
    %c0_i32 = arith.constant 0 : i32
    %c0_i32_0 = arith.constant 0 : i32
    return %arg0, %c0_i32 : i32, i32
  }
  func.func @transform_1(%arg0: i32) -> (i32, i32) {
    %c0_i32 = arith.constant 0 : i32
    %c0_i32_0 = arith.constant 0 : i32
    %c0_i32_1 = arith.constant 0 : i32
    return %c0_i32, %c0_i32_0 : i32, i32
  }
  func.func @transform_2(%arg0: i32) -> (i32, i32) {
    %c0_i32 = arith.constant 0 : i32
    %c0_i32_0 = arith.constant 0 : i32
    %c0_i32_1 = arith.constant 0 : i32
    return %c0_i32, %c0_i32_0 : i32, i32
  }
  func.func @transform_3(%arg0: i32) -> (i32, i32) {
    %c0_i32 = arith.constant 0 : i32
    %c0_i32_0 = arith.constant 0 : i32
    %c0_i32_1 = arith.constant 0 : i32
    return %c0_i32, %c0_i32_0 : i32, i32
  }
  func.func @transform_4(%arg0: i32) -> (i32, i32) {
    %c0_i32 = arith.constant 0 : i32
    %c0_i32_0 = arith.constant 0 : i32
    %c0_i32_1 = arith.constant 0 : i32
    return %c0_i32, %c0_i32_0 : i32, i32
  }
  func.func @transform_5(%arg0: i32) -> (i32, i32) {
    %c0_i32 = arith.constant 0 : i32
    %c0_i32_0 = arith.constant 0 : i32
    return %arg0, %c0_i32 : i32, i32
  }
}

</mosaic_0001>

<llo_original>
// kernel: tpu_custom_call.1
$region0: #{tpu_custom_call.1}
  #allocation0 [shape = 'u32[]', space=smem, size = 0x4, offset = 0x4, fixed_abs, tag = 'smem constant byte address 0x4 - core index']
  #allocation1 [shape = 'u32[144,128]{1,0:T(1,128)}', space=vmem, size = 0x12000, scoped, tag = 'internal scratch']
  %s0 = inlined_call_operand.vmem [shape: f32[128,32], index: 0, kind: input, shape index: {}]
  %s1 = inlined_call_operand.vmem [shape: f32[32,64], index: 1, kind: input, shape index: {}]
  %s2 = inlined_call_operand.vmem [shape: f32[1,64], index: 2, kind: input, shape index: {}]
  %s3 = inlined_call_operand.vmem [shape: f32[32,8], index: 3, kind: input, shape index: {}]
  %s4 = inlined_call_operand.vmem [shape: f32[1,8], index: 4, kind: input, shape index: {}]
  %s5 = inlined_call_operand.vmem [shape: f32[16,8], index: 5, kind: output, shape index: {}]
  %s6 = sld [smem:[#allocation0]]
  $region53: #{tpu_custom_call.1} parent=0
    _
  %s8 = ssub.s32 1, %s6
  %s9 = scalar_select 0, %s8, %s6
  loop: start=0, step=1, limit=4
  $region2: #{tpu_custom_call.1} parent=0 // loop_pre_header
    _
  $region3: #{tpu_custom_call.1} parent=0 // loop_header
    %s11 = sphi 0, %s15
    %p12 = scmp.ge.s32.totalorder %s11, 4
    %s21 = sphi 0, %s23
    %s24 = sphi 0, %s21
    %s25 = sphi 0, %s24
    %s41 = sphi 0, %s25
    %s45 = sphi 0, %s45
    %s47 = sphi 0, %s45
    %s48 = sphi 0, %s47
    %s62 = sphi 0, %s48
    %s66 = sphi 0, %s66
    %s68 = sphi 0, %s66
    %s69 = sphi 0, %s68
    %s83 = sphi 0, %s69
    %s87 = sphi 0, %s87
    %s89 = sphi 0, %s87
    %s90 = sphi 0, %s89
    %s104 = sphi 0, %s90
    %s108 = sphi 0, %s108
    %s110 = sphi 0, %s108
    %s111 = sphi 0, %s110
    %s125 = sphi 0, %s111
    %s131 = sphi 0, %s133
    %s134 = sphi 0, %s131
    %s135 = sphi 0, %s134
    %s151 = sphi 0, %s135
  $region4: #{tpu_custom_call.1} parent=0 // loop_header_branch
    %14 = sbr.rel (%p12) target = $region8
  $region5: #{tpu_custom_call.1} parent=0 // loop_body
    %s16 = ssub.s32 %s11, 1
    %s17 = ssub.s32 %s11, 2
    %s18 = sadd.s32 %s11, 1
    %s19 = ssub.s32 %s11, %s18
    %p20 = scmp.eq.s32.totalorder %s19, 0
    %s22 = sadd.s32 %s21, 1
    %s23 = scalar_select %p20, %s21, %s22
    %p26 = pneg %p20
    %p27 = scmp.eq.s32.totalorder %s11, 1
    %p28 = por %p26, %p27
    %p29 = scmp.ne.s32.totalorder %s21, %s24
    %p30 = scmp.eq.s32.totalorder %s11, 0
    %p31 = por %p29, %p30
    %p32 = scmp.ne.s32.totalorder %s21, %s24
    %p33 = scmp.eq.s32.totalorder %s16, 1
    %p34 = por %p32, %p33
    %p35 = scmp.ne.s32.totalorder %s24, %s25
    %p36 = scmp.eq.s32.totalorder %s16, 0
    %p37 = por %p35, %p36
    %p38 = scmp.ne.s32.totalorder %s24, %s25
    %p39 = scmp.eq.s32.totalorder %s17, 1
    %p40 = por %p38, %p39
    %p42 = scmp.ne.s32.totalorder %s25, %s41
    %p43 = scmp.eq.s32.totalorder %s17, 0
    %p44 = por %p42, %p43
    %s46 = sadd.s32 %s45, 1
    %p49 = scmp.eq.s32.totalorder %s11, 1
    %p50 = scmp.ne.s32.totalorder %s45, %s47
    %p51 = scmp.eq.s32.totalorder %s11, 0
    %p52 = por %p50, %p51
    %p53 = scmp.ne.s32.totalorder %s45, %s47
    %p54 = scmp.eq.s32.totalorder %s16, 1
    %p55 = por %p53, %p54
    %p56 = scmp.ne.s32.totalorder %s47, %s48
    %p57 = scmp.eq.s32.totalorder %s16, 0
    %p58 = por %p56, %p57
    %p59 = scmp.ne.s32.totalorder %s47, %s48
    %p60 = scmp.eq.s32.totalorder %s17, 1
    %p61 = por %p59, %p60
    %p63 = scmp.ne.s32.totalorder %s48, %s62
    %p64 = scmp.eq.s32.totalorder %s17, 0
    %p65 = por %p63, %p64
    %s67 = sadd.s32 %s66, 1
    %p70 = scmp.eq.s32.totalorder %s11, 1
    %p71 = scmp.ne.s32.totalorder %s66, %s68
    %p72 = scmp.eq.s32.totalorder %s11, 0
    %p73 = por %p71, %p72
    %p74 = scmp.ne.s32.totalorder %s66, %s68
    %p75 = scmp.eq.s32.totalorder %s16, 1
    %p76 = por %p74, %p75
    %p77 = scmp.ne.s32.totalorder %s68, %s69
    %p78 = scmp.eq.s32.totalorder %s16, 0
    %p79 = por %p77, %p78
    %p80 = scmp.ne.s32.totalorder %s68, %s69
    %p81 = scmp.eq.s32.totalorder %s17, 1
    %p82 = por %p80, %p81
    %p84 = scmp.ne.s32.totalorder %s69, %s83
    %p85 = scmp.eq.s32.totalorder %s17, 0
    %p86 = por %p84, %p85
    %s88 = sadd.s32 %s87, 1
    %p91 = scmp.eq.s32.totalorder %s11, 1
    %p92 = scmp.ne.s32.totalorder %s87, %s89
    %p93 = scmp.eq.s32.totalorder %s11, 0
    %p94 = por %p92, %p93
    %p95 = scmp.ne.s32.totalorder %s87, %s89
    %p96 = scmp.eq.s32.totalorder %s16, 1
    %p97 = por %p95, %p96
    %p98 = scmp.ne.s32.totalorder %s89, %s90
    %p99 = scmp.eq.s32.totalorder %s16, 0
    %p100 = por %p98, %p99
    %p101 = scmp.ne.s32.totalorder %s89, %s90
    %p102 = scmp.eq.s32.totalorder %s17, 1
    %p103 = por %p101, %p102
    %p105 = scmp.ne.s32.totalorder %s90, %s104
    %p106 = scmp.eq.s32.totalorder %s17, 0
    %p107 = por %p105, %p106
    %s109 = sadd.s32 %s108, 1
    %p112 = scmp.eq.s32.totalorder %s11, 1
    %p113 = scmp.ne.s32.totalorder %s108, %s110
    %p114 = scmp.eq.s32.totalorder %s11, 0
    %p115 = por %p113, %p114
    %p116 = scmp.ne.s32.totalorder %s108, %s110
    %p117 = scmp.eq.s32.totalorder %s16, 1
    %p118 = por %p116, %p117
    %p119 = scmp.ne.s32.totalorder %s110, %s111
    %p120 = scmp.eq.s32.totalorder %s16, 0
    %p121 = por %p119, %p120
    %p122 = scmp.ne.s32.totalorder %s110, %s111
    %p123 = scmp.eq.s32.totalorder %s17, 1
    %p124 = por %p122, %p123
    %p126 = scmp.ne.s32.totalorder %s111, %s125
    %p127 = scmp.eq.s32.totalorder %s17, 0
    %p128 = por %p126, %p127
    %s129 = ssub.s32 %s11, %s18
    %p130 = scmp.eq.s32.totalorder %s129, 0
    %s132 = sadd.s32 %s131, 1
    %s133 = scalar_select %p130, %s131, %s132
    %p136 = pneg %p130
    %p137 = scmp.eq.s32.totalorder %s11, 1
    %p138 = por %p136, %p137
    %p139 = scmp.ne.s32.totalorder %s131, %s134
    %p140 = scmp.eq.s32.totalorder %s11, 0
    %p141 = por %p139, %p140
    %p142 = scmp.ne.s32.totalorder %s131, %s134
    %p143 = scmp.eq.s32.totalorder %s16, 1
    %p144 = por %p142, %p143
    %p145 = scmp.ne.s32.totalorder %s134, %s135
    %p146 = scmp.eq.s32.totalorder %s16, 0
    %p147 = por %p145, %p146
    %p148 = scmp.ne.s32.totalorder %s134, %s135
    %p149 = scmp.eq.s32.totalorder %s17, 1
    %p150 = por %p148, %p149
    %p152 = scmp.ne.s32.totalorder %s135, %s151
    %p153 = scmp.eq.s32.totalorder %s17, 0
    %p154 = por %p152, %p153
    %p155 = scmp.le.s32.totalorder 1, %s11
    %p156 = scmp.lt.s32.totalorder %s11, 3
    %p157 = pnand %p155, %p156
    %p158 = pneg %p157
    // Predicated region
    $region9: #{tpu_custom_call.1} parent=5 // pred_check
      _
    $region10: #{tpu_custom_call.1} parent=5 // pred_check_branch
      %160 = sbr.rel (%p157) target = $region12
    $region11: #{tpu_custom_call.1} parent=5 // pred_region
      %s161 = ssub.s32 %s11, 1
      // Predicated region
      $region13: #{tpu_custom_call.1} parent=11 // pred_check
        %p162 = pneg %p58
      $region14: #{tpu_custom_call.1} parent=11 // pred_check_branch
        %164 = sbr.rel (%p162) target = $region16
      $region15: #{tpu_custom_call.1} parent=11 // pred_region
        _
      $region16: #{tpu_custom_call.1} parent=11 // pred_fallthru
        _
      // Predicated region
      $region17: #{tpu_custom_call.1} parent=11 // pred_check
        %p165 = pneg %p79
      $region18: #{tpu_custom_call.1} parent=11 // pred_check_branch
        %167 = sbr.rel (%p165) target = $region20
      $region19: #{tpu_custom_call.1} parent=11 // pred_region
        _
      $region20: #{tpu_custom_call.1} parent=11 // pred_fallthru
        _
      // Predicated region
      $region21: #{tpu_custom_call.1} parent=11 // pred_check
        %p168 = pneg %p100
      $region22: #{tpu_custom_call.1} parent=11 // pred_check_branch
        %170 = sbr.rel (%p168) target = $region24
      $region23: #{tpu_custom_call.1} parent=11 // pred_region
        _
      $region24: #{tpu_custom_call.1} parent=11 // pred_fallthru
        _
      // Predicated region
      $region25: #{tpu_custom_call.1} parent=11 // pred_check
        %p171 = pneg %p121
      $region26: #{tpu_custom_call.1} parent=11 // pred_check_branch
        %173 = sbr.rel (%p171) target = $region28
      $region27: #{tpu_custom_call.1} parent=11 // pred_region
        _
      $region28: #{tpu_custom_call.1} parent=11 // pred_fallthru
        _
    $region12: #{tpu_custom_call.1} parent=5 // pred_fallthru
      _
    %p174 = scmp.lt.s32.totalorder %s11, 2
    // Predicated region
    $region29: #{tpu_custom_call.1} parent=5 // pred_check
      %p175 = pneg %p174
    $region30: #{tpu_custom_call.1} parent=5 // pred_check_branch
      %177 = sbr.rel (%p175) target = $region32
    $region31: #{tpu_custom_call.1} parent=5 // pred_region
      // Predicated region
      $region33: #{tpu_custom_call.1} parent=31 // pred_check
        %p178 = pneg %p31
      $region34: #{tpu_custom_call.1} parent=31 // pred_check_branch
        %180 = sbr.rel (%p178) target = $region36
      $region35: #{tpu_custom_call.1} parent=31 // pred_region
        %s181 = smul.u32 8, %s11
        %p182 = scmp.lt.s32.totalorder %s181, 15
        %s183 = scalar_select %p182, %s181, 15
        %s184 = smul.addr %s183, 8
        %s185 = scalar_lea.vmem %s0, %s184
        %s186 = smul.u32 8, %s11
      $region36: #{tpu_custom_call.1} parent=31 // pred_fallthru
        _
    $region32: #{tpu_custom_call.1} parent=5 // pred_fallthru
      _
    %p187 = scmp.le.s32.totalorder 1, %s11
    %p188 = scmp.lt.s32.totalorder %s11, 3
    %p189 = pnand %p187, %p188
    %p190 = pneg %p189
    // Predicated region
    $region37: #{tpu_custom_call.1} parent=5 // pred_check
      _
    $region38: #{tpu_custom_call.1} parent=5 // pred_check_branch
      %192 = sbr.rel (%p189) target = $region40
    $region39: #{tpu_custom_call.1} parent=5 // pred_region
      %s193 = ssub.s32 %s11, 1
      %s194 = smul.u32 8, %s16
      %p195 = scmp.lt.s32.totalorder %s194, 15
      %s196 = scalar_select %p195, %s194, 15
      %s197 = smul.addr %s196, 8
      %s198 = scalar_lea.vmem %s0, %s197
      %p199 = pneg %p37
      %p200 = pneg %p34
      %p201 = pneg %p58
      %p202 = pneg %p55
      %p203 = pneg %p79
      %p204 = pneg %p76
      %p205 = pneg %p100
      %p206 = pneg %p97
      %p207 = pneg %p121
      %p208 = pneg %p118
      %p209 = pneg %p147
      %p210 = pneg %p144
      %p211 = scmp.lt.s32.totalorder %s16, 1
      %s212 = scalar_select %p211, %s16, 1
      %s213 = smul.addr %s212, 8
      %s214 = scalar_lea.vmem %s5, %s213
      %s215 = smul.u32 8, %s16
      %p216 = scmp.lt.s32.totalorder %s215, 15
      %s217 = scalar_select %p216, %s215, 15
      %s218 = smul.addr %s217, 8
      %s219 = scalar_lea.vmem %s0, %s218
      %s220 = smul.u32 8, %s16
      %p221 = scmp.lt.s32.totalorder %s16, 1
      %s222 = scalar_select %p221, %s16, 1
      %s223 = smul.addr %s222, 8
      %s224 = scalar_lea.vmem %s5, %s223
      %v225 = vld [vmem:[%s219] sm:$0xff]
      %v226 = vld [vmem:[%s219 + $0x8] sm:$0xff]
      %v227 = vld [vmem:[%s219 + $0x10] sm:$0xff]
      %v228 = vld [vmem:[%s219 + $0x18] sm:$0xff]
      %v229 = vld [vmem:[%s219 + $0x20] sm:$0xff]
      %v230 = vld [vmem:[%s219 + $0x28] sm:$0xff]
      %v231 = vld [vmem:[%s219 + $0x30] sm:$0xff]
      %v232 = vld [vmem:[%s219 + $0x38] sm:$0xff]
      %v233 = vld [vmem:[%s1] sm:$0xff]
      %v234 = vld [vmem:[%s1 + $0x8] sm:$0xff]
      %v235 = vld [vmem:[%s1 + $0x10] sm:$0xff]
      %v236 = vld [vmem:[%s1 + $0x18] sm:$0xff]
      %v237 = vld [vmem:[%s2] sm:$0x1]
      %v239 = vlaneseq
      %v240 = vshrl.u32 %v239, 7
      %v241 = vsub.s32 0, %v240
      %v242 = vrot.slane %v237, %v241
      %vm244 = vcmask 261120
      %v246 = vsel %vm244, %v225, 0
      %v249 = vsel %vm244, %v226, 0
      %v252 = vsel %vm244, %v227, 0
      %v255 = vsel %vm244, %v228, 0
      %v258 = vsel %vm244, %v229, 0
      %v261 = vsel %vm244, %v230, 0
      %v264 = vsel %vm244, %v231, 0
      %v267 = vsel %vm244, %v232, 0
      %269 = vmatprep.subr.mxu0 0.0
      %270 = vmatpush1.msra.mxu0 0.0
      %271 = vmatprep.subr.mxu0 0.0
      %272 = vmatpush1.msra.mxu0 0.0
      %273 = vmatprep.subr.mxu0 0.0
      %274 = vmatpush1.msra.mxu0 0.0
      %275 = vmatprep.subr.mxu0 0.0
      %276 = vmatpush1.msra.mxu0 0.0
      %277 = vmatprep.subr.mxu0 0.0
      %278 = vmatpush1.msra.mxu0 0.0
      %279 = vmatprep.subr.mxu0 0.0
      %280 = vmatpush1.msra.mxu0 0.0
      %281 = vmatprep.subr.mxu0 0.0
      %282 = vmatpush1.msra.mxu0 0.0
      %283 = vmatprep.subr.mxu0 0.0
      %284 = vmatpush1.msra.mxu0 0.0
      %285 = vmatprep.subr.mxu0 0.0
      %286 = vmatpush1.msra.mxu0 0.0
      %287 = vmatprep.subr.mxu0 0.0
      %288 = vmatpush1.msra.mxu0 0.0
      %289 = vmatprep.subr.mxu0 0.0
      %290 = vmatpush1.msra.mxu0 0.0
      %291 = vmatprep.subr.mxu0 0.0
      %292 = vmatpush1.msra.mxu0 0.0
      %293 = vmatprep.subr.mxu0 0.0
      %294 = vmatpush1.msra.mxu0 %v236
      %295 = vmatprep.subr.mxu0 0.0
      %296 = vmatpush1.msra.mxu0 %v235
      %297 = vmatprep.subr.mxu0 0.0
      %298 = vmatpush1.msra.mxu0 %v234
      %299 = vmatprep.subr.mxu0 0.0
      %300 = vmatpush1.msra.mxu0 %v233
      %301 = vmatprep.subr.mxu0 0.0
      %302 = vmatpush2.msra.mxu0 0.0
      %303 = vmatprep.subr.mxu0 0.0
      %304 = vmatpush2.msra.mxu0 0.0
      %305 = vmatprep.subr.mxu0 0.0
      %306 = vmatpush2.msra.mxu0 0.0
      %307 = vmatprep.subr.mxu0 0.0
      %308 = vmatpush2.msra.mxu0 0.0
      %309 = vmatprep.subr.mxu0 0.0
      %310 = vmatpush2.msra.mxu0 0.0
      %311 = vmatprep.subr.mxu0 0.0
      %312 = vmatpush2.msra.mxu0 0.0
      %313 = vmatprep.subr.mxu0 0.0
      %314 = vmatpush2.msra.mxu0 0.0
      %315 = vmatprep.subr.mxu0 0.0
      %316 = vmatpush2.msra.mxu0 0.0
      %317 = vmatprep.subr.mxu0 0.0
      %318 = vmatpush2.msra.mxu0 0.0
      %319 = vmatprep.subr.mxu0 0.0
      %320 = vmatpush2.msra.mxu0 0.0
      %321 = vmatprep.subr.mxu0 0.0
      %322 = vmatpush2.msra.mxu0 0.0
      %323 = vmatprep.subr.mxu0 0.0
      %324 = vmatpush2.msra.mxu0 0.0
      %325 = vmatprep.subr.mxu0 0.0
      %326 = vmatpush2.msra.mxu0 0.0
      %327 = vmatprep.subr.mxu0 0.0
      %328 = vmatpush2.msra.mxu0 0.0
      %329 = vmatprep.subr.mxu0 0.0
      %330 = vmatpush2.msra.mxu0 0.0
      %331 = vmatprep.subr.mxu0 0.0
      %332 = vmatpush2.msra.mxu0 0.0
      %333 = vmatprep.mubr.f32.mxu0 0.0
      %334 = vmatmul.mubr.f32.gmra.mxu0 %v246
      %v335 = vpop.f32.mrf.mxu0
      %v336 = vadd.f32 %v242, %v335
      %v337 = vpop.f32.mrf.mxu0
      %338 = vmatprep.mubr.f32.mxu0 0.0
      %339 = vmatmul.mubr.f32.gmra.mxu0 %v249
      %v340 = vpop.f32.mrf.mxu0
      %v341 = vadd.f32 %v242, %v340
      %v342 = vpop.f32.mrf.mxu0
      %343 = vmatprep.mubr.f32.mxu0 0.0
      %344 = vmatmul.mubr.f32.gmra.mxu0 %v252
      %v345 = vpop.f32.mrf.mxu0
      %v346 = vadd.f32 %v242, %v345
      %v347 = vpop.f32.mrf.mxu0
      %348 = vmatprep.mubr.f32.mxu0 0.0
      %349 = vmatmul.mubr.f32.gmra.mxu0 %v255
      %v350 = vpop.f32.mrf.mxu0
      %v351 = vadd.f32 %v242, %v350
      %v352 = vpop.f32.mrf.mxu0
      %353 = vmatprep.mubr.f32.mxu0 0.0
      %354 = vmatmul.mubr.f32.gmra.mxu0 %v258
      %v355 = vpop.f32.mrf.mxu0
      %v356 = vadd.f32 %v242, %v355
      %v357 = vpop.f32.mrf.mxu0
      %358 = vmatprep.mubr.f32.mxu0 0.0
      %359 = vmatmul.mubr.f32.gmra.mxu0 %v261
      %v360 = vpop.f32.mrf.mxu0
      %v361 = vadd.f32 %v242, %v360
      %v362 = vpop.f32.mrf.mxu0
      %363 = vmatprep.mubr.f32.mxu0 0.0
      %364 = vmatmul.mubr.f32.gmra.mxu0 %v264
      %v365 = vpop.f32.mrf.mxu0
      %v366 = vadd.f32 %v242, %v365
      %v367 = vpop.f32.mrf.mxu0
      %368 = vmatprep.mubr.f32.mxu0 0.0
      %369 = vmatmul.mubr.f32.gmra.mxu0 %v267
      %v370 = vpop.f32.mrf.mxu0
      %v371 = vadd.f32 %v242, %v370
      %v372 = vpop.f32.mrf.mxu0
      %373 = vdwg.mxu0
      %vm374 = vcmask 523520
      %v375 = vsel %vm374, %v336, -inf
      %v376 = vrot.slane %v375, 4
      %v377 = vmax.f32 %v375, %v376
      %v378 = vrot.slane %v377, 2
      %v379 = vmax.f32 %v377, %v378
      %v380 = vrot.slane %v379, 1
      %v381 = vmax.f32 %v379, %v380
      %v382 = vsel %vm374, %v341, -inf
      %v383 = vrot.slane %v382, 4
      %v384 = vmax.f32 %v382, %v383
      %v385 = vrot.slane %v384, 2
      %v386 = vmax.f32 %v384, %v385
      %v387 = vrot.slane %v386, 1
      %v388 = vmax.f32 %v386, %v387
      %v389 = vsel %vm374, %v346, -inf
      %v390 = vrot.slane %v389, 4
      %v391 = vmax.f32 %v389, %v390
      %v392 = vrot.slane %v391, 2
      %v393 = vmax.f32 %v391, %v392
      %v394 = vrot.slane %v393, 1
      %v395 = vmax.f32 %v393, %v394
      %v396 = vsel %vm374, %v351, -inf
      %v397 = vrot.slane %v396, 4
      %v398 = vmax.f32 %v396, %v397
      %v399 = vrot.slane %v398, 2
      %v400 = vmax.f32 %v398, %v399
      %v401 = vrot.slane %v400, 1
      %v402 = vmax.f32 %v400, %v401
      %v403 = vsel %vm374, %v356, -inf
      %v404 = vrot.slane %v403, 4
      %v405 = vmax.f32 %v403, %v404
      %v406 = vrot.slane %v405, 2
      %v407 = vmax.f32 %v405, %v406
      %v408 = vrot.slane %v407, 1
      %v409 = vmax.f32 %v407, %v408
      %v410 = vsel %vm374, %v361, -inf
      %v411 = vrot.slane %v410, 4
      %v412 = vmax.f32 %v410, %v411
      %v413 = vrot.slane %v412, 2
      %v414 = vmax.f32 %v412, %v413
      %v415 = vrot.slane %v414, 1
      %v416 = vmax.f32 %v414, %v415
      %v417 = vsel %vm374, %v366, -inf
      %v418 = vrot.slane %v417, 4
      %v419 = vmax.f32 %v417, %v418
      %v420 = vrot.slane %v419, 2
      %v421 = vmax.f32 %v419, %v420
      %v422 = vrot.slane %v421, 1
      %v423 = vmax.f32 %v421, %v422
      %v424 = vsel %vm374, %v371, -inf
      %v425 = vrot.slane %v424, 4
      %v426 = vmax.f32 %v424, %v425
      %v427 = vrot.slane %v426, 2
      %v428 = vmax.f32 %v426, %v427
      %v429 = vrot.slane %v428, 1
      %v430 = vmax.f32 %v428, %v429
      %v431 = vsub.f32 %v336, %v381
      %v432 = vsub.f32 %v341, %v388
      %v433 = vsub.f32 %v346, %v395
      %v434 = vsub.f32 %v351, %v402
      %v435 = vsub.f32 %v356, %v409
      %v436 = vsub.f32 %v361, %v416
      %v437 = vsub.f32 %v366, %v423
      %v438 = vsub.f32 %v371, %v430
      %v439 = vmul.f32 %v431, 1.442695
      %v440 = vpow.pop %v439
      %v441 = vmul.f32 %v432, 1.442695
      %v442 = vpow.pop %v441
      %v443 = vmul.f32 %v433, 1.442695
      %v444 = vpow.pop %v443
      %v445 = vmul.f32 %v434, 1.442695
      %v446 = vpow.pop %v445
      %v447 = vmul.f32 %v435, 1.442695
      %v448 = vpow.pop %v447
      %v449 = vmul.f32 %v436, 1.442695
      %v450 = vpow.pop %v449
      %v451 = vmul.f32 %v437, 1.442695
      %v452 = vpow.pop %v451
      %v453 = vmul.f32 %v438, 1.442695
      %v454 = vpow.pop %v453
      %v455 = vsel %vm374, %v440, 0.0
      %v456 = vrot.slane %v455, 4
      %v457 = vadd.f32 %v455, %v456
      %v458 = vrot.slane %v457, 2
      %v459 = vadd.f32 %v457, %v458
      %v460 = vrot.slane %v459, 1
      %v461 = vadd.f32 %v459, %v460
      %v462 = vsel %vm374, %v442, 0.0
      %v463 = vrot.slane %v462, 4
      %v464 = vadd.f32 %v462, %v463
      %v465 = vrot.slane %v464, 2
      %v466 = vadd.f32 %v464, %v465
      %v467 = vrot.slane %v466, 1
      %v468 = vadd.f32 %v466, %v467
      %v469 = vsel %vm374, %v444, 0.0
      %v470 = vrot.slane %v469, 4
      %v471 = vadd.f32 %v469, %v470
      %v472 = vrot.slane %v471, 2
      %v473 = vadd.f32 %v471, %v472
      %v474 = vrot.slane %v473, 1
      %v475 = vadd.f32 %v473, %v474
      %v476 = vsel %vm374, %v446, 0.0
      %v477 = vrot.slane %v476, 4
      %v478 = vadd.f32 %v476, %v477
      %v479 = vrot.slane %v478, 2
      %v480 = vadd.f32 %v478, %v479
      %v481 = vrot.slane %v480, 1
      %v482 = vadd.f32 %v480, %v481
      %v483 = vsel %vm374, %v448, 0.0
      %v484 = vrot.slane %v483, 4
      %v485 = vadd.f32 %v483, %v484
      %v486 = vrot.slane %v485, 2
      %v487 = vadd.f32 %v485, %v486
      %v488 = vrot.slane %v487, 1
      %v489 = vadd.f32 %v487, %v488
      %v490 = vsel %vm374, %v450, 0.0
      %v491 = vrot.slane %v490, 4
      %v492 = vadd.f32 %v490, %v491
      %v493 = vrot.slane %v492, 2
      %v494 = vadd.f32 %v492, %v493
      %v495 = vrot.slane %v494, 1
      %v496 = vadd.f32 %v494, %v495
      %v497 = vsel %vm374, %v452, 0.0
      %v498 = vrot.slane %v497, 4
      %v499 = vadd.f32 %v497, %v498
      %v500 = vrot.slane %v499, 2
      %v501 = vadd.f32 %v499, %v500
      %v502 = vrot.slane %v501, 1
      %v503 = vadd.f32 %v501, %v502
      %v504 = vsel %vm374, %v454, 0.0
      %v505 = vrot.slane %v504, 4
      %v506 = vadd.f32 %v504, %v505
      %v507 = vrot.slane %v506, 2
      %v508 = vadd.f32 %v506, %v507
      %v509 = vrot.slane %v508, 1
      %v510 = vadd.f32 %v508, %v509
      %v511 = vrcp.pop %v461
      %v512 = vrcp.pop %v468
      %v513 = vrcp.pop %v475
      %v514 = vrcp.pop %v482
      %v515 = vrcp.pop %v489
      %v516 = vrcp.pop %v496
      %v517 = vrcp.pop %v503
      %v518 = vrcp.pop %v510
      %v519 = vmul.f32 %v440, %v511
      %v520 = vmul.f32 %v442, %v512
      %v521 = vmul.f32 %v444, %v513
      %v522 = vmul.f32 %v446, %v514
      %v523 = vmul.f32 %v448, %v515
      %v524 = vmul.f32 %v450, %v516
      %v525 = vmul.f32 %v452, %v517
      %v526 = vmul.f32 %v454, %v518
      %535 = vrot.lane.b32.xlu0 %v336, 32
      %v536 = vpop.permute.xlu0 %535
      %537 = vrot.lane.b32.xlu0 %v341, 32
      %v538 = vpop.permute.xlu0 %537
      %539 = vrot.lane.b32.xlu0 %v346, 32
      %v540 = vpop.permute.xlu0 %539
      %541 = vrot.lane.b32.xlu0 %v351, 32
      %v542 = vpop.permute.xlu0 %541
      %543 = vrot.lane.b32.xlu0 %v356, 32
      %v544 = vpop.permute.xlu0 %543
      %545 = vrot.lane.b32.xlu0 %v361, 32
      %v546 = vpop.permute.xlu0 %545
      %547 = vrot.lane.b32.xlu0 %v366, 32
      %v548 = vpop.permute.xlu0 %547
      %549 = vrot.lane.b32.xlu0 %v371, 32
      %v550 = vpop.permute.xlu0 %549
      %v559 = vmul.f32 %v519, %v536
      %v560 = vmul.f32 %v520, %v538
      %v561 = vmul.f32 %v521, %v540
      %v562 = vmul.f32 %v522, %v542
      %v563 = vmul.f32 %v523, %v544
      %v564 = vmul.f32 %v524, %v546
      %v565 = vmul.f32 %v525, %v548
      %v566 = vmul.f32 %v526, %v550
      %v567 = vsel %vm374, %v559, 0.0
      %v568 = vrot.slane %v567, 4
      %v569 = vadd.f32 %v567, %v568
      %v570 = vrot.slane %v569, 2
      %v571 = vadd.f32 %v569, %v570
      %v572 = vrot.slane %v571, 1
      %v573 = vadd.f32 %v571, %v572
      %v574 = vsel %vm374, %v560, 0.0
      %v575 = vrot.slane %v574, 4
      %v576 = vadd.f32 %v574, %v575
      %v577 = vrot.slane %v576, 2
      %v578 = vadd.f32 %v576, %v577
      %v579 = vrot.slane %v578, 1
      %v580 = vadd.f32 %v578, %v579
      %v581 = vsel %vm374, %v561, 0.0
      %v582 = vrot.slane %v581, 4
      %v583 = vadd.f32 %v581, %v582
      %v584 = vrot.slane %v583, 2
      %v585 = vadd.f32 %v583, %v584
      %v586 = vrot.slane %v585, 1
      %v587 = vadd.f32 %v585, %v586
      %v588 = vsel %vm374, %v562, 0.0
      %v589 = vrot.slane %v588, 4
      %v590 = vadd.f32 %v588, %v589
      %v591 = vrot.slane %v590, 2
      %v592 = vadd.f32 %v590, %v591
      %v593 = vrot.slane %v592, 1
      %v594 = vadd.f32 %v592, %v593
      %v595 = vsel %vm374, %v563, 0.0
      %v596 = vrot.slane %v595, 4
      %v597 = vadd.f32 %v595, %v596
      %v598 = vrot.slane %v597, 2
      %v599 = vadd.f32 %v597, %v598
      %v600 = vrot.slane %v599, 1
      %v601 = vadd.f32 %v599, %v600
      %v602 = vsel %vm374, %v564, 0.0
      %v603 = vrot.slane %v602, 4
      %v604 = vadd.f32 %v602, %v603
      %v605 = vrot.slane %v604, 2
      %v606 = vadd.f32 %v604, %v605
      %v607 = vrot.slane %v606, 1
      %v608 = vadd.f32 %v606, %v607
      %v609 = vsel %vm374, %v565, 0.0
      %v610 = vrot.slane %v609, 4
      %v611 = vadd.f32 %v609, %v610
      %v612 = vrot.slane %v611, 2
      %v613 = vadd.f32 %v611, %v612
      %v614 = vrot.slane %v613, 1
      %v615 = vadd.f32 %v613, %v614
      %v616 = vsel %vm374, %v566, 0.0
      %v617 = vrot.slane %v616, 4
      %v618 = vadd.f32 %v616, %v617
      %v619 = vrot.slane %v618, 2
      %v620 = vadd.f32 %v618, %v619
      %v621 = vrot.slane %v620, 1
      %v622 = vadd.f32 %v620, %v621
      %v623 = vld [vmem:[%s3] sm:$0xff]
      %v624 = vld [vmem:[%s3 + $0x8] sm:$0xff]
      %v625 = vld [vmem:[%s3 + $0x10] sm:$0xff]
      %v626 = vld [vmem:[%s3 + $0x18] sm:$0xff]
      %v627 = vld [vmem:[%s4] sm:$0x1]
      %v629 = vlaneseq
      %v630 = vshrl.u32 %v629, 7
      %v631 = vsub.s32 0, %v630
      %v632 = vrot.slane %v627, %v631
      %vm642 = vcmask 1041409
      %v643 = vsel %vm642, %v580, %v573
      %vm644 = vcmask 1042434
      %v645 = vsel %vm644, %v587, %v643
      %vm646 = vcmask 1043459
      %v647 = vsel %vm646, %v594, %v645
      %vm648 = vcmask 1044484
      %v649 = vsel %vm648, %v601, %v647
      %vm650 = vcmask 1045509
      %v651 = vsel %vm650, %v608, %v649
      %vm652 = vcmask 1046534
      %v653 = vsel %vm652, %v615, %v651
      %vm654 = vcmask 1047559
      %v655 = vsel %vm654, %v622, %v653
      %656 = vrot.lane.b32.xlu0 %v655, 96
      %v657 = vpop.permute.xlu0 %656
      %v658 = vsel %vm244, %v657, 0
      %660 = vmatprep.subr.mxu0 0.0
      %661 = vmatpush1.msra.mxu0 0.0
      %662 = vmatprep.subr.mxu0 0.0
      %663 = vmatpush1.msra.mxu0 0.0
      %664 = vmatprep.subr.mxu0 0.0
      %665 = vmatpush1.msra.mxu0 0.0
      %666 = vmatprep.subr.mxu0 0.0
      %667 = vmatpush1.msra.mxu0 0.0
      %668 = vmatprep.subr.mxu0 0.0
      %669 = vmatpush1.msra.mxu0 0.0
      %670 = vmatprep.subr.mxu0 0.0
      %671 = vmatpush1.msra.mxu0 0.0
      %672 = vmatprep.subr.mxu0 0.0
      %673 = vmatpush1.msra.mxu0 0.0
      %674 = vmatprep.subr.mxu0 0.0
      %675 = vmatpush1.msra.mxu0 0.0
      %676 = vmatprep.subr.mxu0 0.0
      %677 = vmatpush1.msra.mxu0 0.0
      %678 = vmatprep.subr.mxu0 0.0
      %679 = vmatpush1.msra.mxu0 0.0
      %680 = vmatprep.subr.mxu0 0.0
      %681 = vmatpush1.msra.mxu0 0.0
      %682 = vmatprep.subr.mxu0 0.0
      %683 = vmatpush1.msra.mxu0 0.0
      %684 = vmatprep.subr.mxu0 0.0
      %685 = vmatpush1.msra.mxu0 %v626
      %686 = vmatprep.subr.mxu0 0.0
      %687 = vmatpush1.msra.mxu0 %v625
      %688 = vmatprep.subr.mxu0 0.0
      %689 = vmatpush1.msra.mxu0 %v624
      %690 = vmatprep.subr.mxu0 0.0
      %691 = vmatpush1.msra.mxu0 %v623
      %692 = vmatprep.subr.mxu0 0.0
      %693 = vmatpush2.msra.mxu0 0.0
      %694 = vmatprep.subr.mxu0 0.0
      %695 = vmatpush2.msra.mxu0 0.0
      %696 = vmatprep.subr.mxu0 0.0
      %697 = vmatpush2.msra.mxu0 0.0
      %698 = vmatprep.subr.mxu0 0.0
      %699 = vmatpush2.msra.mxu0 0.0
      %700 = vmatprep.subr.mxu0 0.0
      %701 = vmatpush2.msra.mxu0 0.0
      %702 = vmatprep.subr.mxu0 0.0
      %703 = vmatpush2.msra.mxu0 0.0
      %704 = vmatprep.subr.mxu0 0.0
      %705 = vmatpush2.msra.mxu0 0.0
      %706 = vmatprep.subr.mxu0 0.0
      %707 = vmatpush2.msra.mxu0 0.0
      %708 = vmatprep.subr.mxu0 0.0
      %709 = vmatpush2.msra.mxu0 0.0
      %710 = vmatprep.subr.mxu0 0.0
      %711 = vmatpush2.msra.mxu0 0.0
      %712 = vmatprep.subr.mxu0 0.0
      %713 = vmatpush2.msra.mxu0 0.0
      %714 = vmatprep.subr.mxu0 0.0
      %715 = vmatpush2.msra.mxu0 0.0
      %716 = vmatprep.subr.mxu0 0.0
      %717 = vmatpush2.msra.mxu0 0.0
      %718 = vmatprep.subr.mxu0 0.0
      %719 = vmatpush2.msra.mxu0 0.0
      %720 = vmatprep.subr.mxu0 0.0
      %721 = vmatpush2.msra.mxu0 0.0
      %722 = vmatprep.subr.mxu0 0.0
      %723 = vmatpush2.msra.mxu0 0.0
      %724 = vmatprep.mubr.f32.mxu0 0.0
      %725 = vmatmul.mubr.f32.gmra.mxu0 %v658
      %v726 = vpop.f32.mrf.mxu0
      %v727 = vadd.f32 %v632, %v726
      %v728 = vpop.f32.mrf.mxu0
      %729 = vdwg.mxu0
      %vm730 = vcmask 64512
      %731 = vst.msk [vmem:[%s224] sm:$0xff] %vm730, %v727
      %p732 = scmp.lt.s32.totalorder %s16, 1
      %s733 = scalar_select %p732, %s16, 1
      %s734 = smul.addr %s733, 8
      %s735 = scalar_lea.vmem %s5, %s734
      // Predicated region
      $region41: #{tpu_custom_call.1} parent=39 // pred_check
        %p736 = pneg %p144
      $region42: #{tpu_custom_call.1} parent=39 // pred_check_branch
        %738 = sbr.rel (%p736) target = $region44
      $region43: #{tpu_custom_call.1} parent=39 // pred_region
        _
      $region44: #{tpu_custom_call.1} parent=39 // pred_fallthru
        _
    $region40: #{tpu_custom_call.1} parent=5 // pred_fallthru
      _
    %p739 = scmp.le.s32.totalorder 2, %s11
    // Predicated region
    $region45: #{tpu_custom_call.1} parent=5 // pred_check
      %p740 = pneg %p739
    $region46: #{tpu_custom_call.1} parent=5 // pred_check_branch
      %742 = sbr.rel (%p740) target = $region48
    $region47: #{tpu_custom_call.1} parent=5 // pred_region
      %s743 = ssub.s32 %s11, 2
      // Predicated region
      $region49: #{tpu_custom_call.1} parent=47 // pred_check
        %p744 = pneg %p150
      $region50: #{tpu_custom_call.1} parent=47 // pred_check_branch
        %746 = sbr.rel (%p744) target = $region52
      $region51: #{tpu_custom_call.1} parent=47 // pred_region
        %p747 = scmp.lt.s32.totalorder %s17, 1
        %s748 = scalar_select %p747, %s17, 1
        %s749 = smul.addr %s748, 8
        %s750 = scalar_lea.vmem %s5, %s749
      $region52: #{tpu_custom_call.1} parent=47 // pred_fallthru
        _
    $region48: #{tpu_custom_call.1} parent=5 // pred_fallthru
      _
  $region6: #{tpu_custom_call.1} parent=0 // loop_footer
    %s15 = sadd.s32 1, %s11
  $region7: #{tpu_custom_call.1} parent=0 // loop_footer_branch
    %10 = sbr.rel target = $region3
  $region8: #{tpu_custom_call.1} parent=0 // loop_exit
    _

</llo_original>
